<compile_context>
chip_gen: v6e
topology: v6e:2x2x1
jax: 0.10.0
libtpu: 0.0.40
codegen_flags: <defaults>
</compile_context>

<pallas_src>
import functools
import math

import jax
import jax.numpy as jnp
from jax import lax
from jax.experimental import pallas as pl
from jax.experimental.pallas import tpu as pltpu


def _round_up(x, m):
    return ((x + m - 1) // m) * m


def _vmem_capacity_bytes():
    """Physical VMEM per TensorCore for this generation (fallback: 64 MiB, v7x)."""
    try:
        cap = getattr(pltpu.get_tpu_info(), "vmem_capacity_bytes", None)
        if cap:
            return int(cap)
    except Exception:
        pass
    return 64 << 20


def _pick_token_tile(n_tokens, d_model, out_itemsize, vmem_cap):
    """Choose (token_tile, padded_token_count)."""
    # ~2 MiB output tiles amortize per-grid-step overhead while staying small
    # next to the (double-buffered) resident table even on v7x's 64 MiB VMEM.
    target_bytes = min(2 << 20, max(256 << 10, vmem_cap // 16))
    target = target_bytes // max(1, d_model * out_itemsize)
    target = max(8, min(1024, (target // 8) * 8))
    if n_tokens <= target:
        tile = _round_up(n_tokens, 8)
        return tile, tile
    # Prefer a tile that divides n_tokens exactly: padded outputs force a full
    # post-kernel slice copy (~2x HBM traffic on a memory-bound kernel).  Only
    # accept divisors within 2x of the target; tinier tiles cost more in
    # per-step overhead than the padding copy does.
    if n_tokens % 8 == 0:
        cand = target
        floor = max(8, target // 2)
        while cand >= floor:
            if n_tokens % cand == 0:
                return cand, n_tokens
            cand -= 8
    return target, _round_up(n_tokens, target)


def _use_onehot(vocab_size, d_model, table_dtype, vmem_cap):
    """One-hot MXU gather only while the matmul hides under the HBM writeback."""
    itemsize = jnp.dtype(table_dtype).itemsize
    # Mem-bound vocab ceilings (V <= MXU_flops * out_bytes / (2 * HBM_BW)) taken
    # at the most restrictive generation (v5e); f32 tables pay the MXU multipass.
    ceiling = 448 if itemsize <= 2 else 112
    if vocab_size > ceiling:
        return False
    # Resident table is double-buffered by the pipeline; keep it a small slice
    # of VMEM so tiles + headroom still fit (matters most on v7x's 64 MiB).
    table_budget = min(16 << 20, vmem_cap // 4)
    return 2 * vocab_size * d_model * itemsize <= table_budget


# ---------------------------------------------------------------------------
# Path A: small vocab — one-hot MXU gather on a VMEM-resident table.
# ---------------------------------------------------------------------------
def _onehot_embed_kernel(ids_ref, table_ref, out_ref, *, scale, vocab_size):
    tile = out_ref.shape[0]
    ids = ids_ref[...]                                                # (tile, 1)
    iota = lax.broadcasted_iota(jnp.int32, (tile, vocab_size), 1)     # (tile, V)
    onehot = (iota == ids).astype(table_ref.dtype)                    # (tile, V)
    gathered = jnp.dot(onehot, table_ref[...],
                       preferred_element_type=jnp.float32)            # (tile, D)
    # Scale kept as a separate VPU multiply (free on the mem-bound path) to
    # exactly match reference numerics instead of folding it into the one-hot.
    out_ref[...] = (gathered * scale).astype(out_ref.dtype)


def _onehot_embed(ids_flat, table, tile, n_pad, scale, vmem_cap):
    vocab_size, d_model = table.shape
    out_itemsize = table.dtype.itemsize
    n_tiles = n_pad // tile
    ids_col = ids_flat.reshape(n_pad, 1)

    # VMEM accounting that matches the actual allocations.
    table_bytes = vocab_size * d_model * out_itemsize
    ids_block_bytes = tile * 128 * 4                 # (tile, 1) int32 lane-padded
    out_block_bytes = tile * d_model * out_itemsize
    needed = (2 * table_bytes                        # resident table, double-buffered
              + 2 * ids_block_bytes + 2 * out_block_bytes
              + tile * vocab_size * 4                # one-hot temporary
              + tile * d_model * 4                   # f32 accumulator before cast
              + (2 << 20))                           # compiler headroom
    vmem_limit = int(min(max(needed, 32 << 20), int(0.85 * vmem_cap)))

    kernel = functools.partial(_onehot_embed_kernel, scale=scale,
                               vocab_size=vocab_size)
    grid_spec = pltpu.PrefetchScalarGridSpec(
        num_scalar_prefetch=0,
        grid=(n_tiles,),
        in_specs=[
            pl.BlockSpec((tile, 1), lambda i: (i, 0)),                 # ids tile
            pl.BlockSpec((vocab_size, d_model), lambda i: (0, 0)),     # resident table
        ],
        out_specs=pl.BlockSpec((tile, d_model), lambda i: (i, 0)),
    )
    return pl.pallas_call(
        kernel,
        out_shape=jax.ShapeDtypeStruct((n_pad, d_model), table.dtype),
        grid_spec=grid_spec,
        compiler_params=pltpu.CompilerParams(
            dimension_semantics=("parallel",),
            vmem_limit_bytes=vmem_limit,
        ),
    )(ids_col, table)


# ---------------------------------------------------------------------------
# Path B: general vocab — table stays in HBM, per-token row DMAs gather
# straight into the output block (all T copies in flight at once).
# ---------------------------------------------------------------------------
def _dma_gather_kernel(ids_ref, table_hbm, out_ref, copy_sem, *, scale, tile):
    base = pl.program_id(0) * tile

    def issue(j, carry):
        row = ids_ref[base + j]
        pltpu.make_async_copy(table_hbm.at[pl.ds(row, 1)],
                              out_ref.at[pl.ds(j, 1)], copy_sem).start()
        return carry

    lax.fori_loop(0, tile, issue, 0)

    def drain(j, carry):
        pltpu.make_async_copy(table_hbm.at[pl.ds(0, 1)],
                              out_ref.at[pl.ds(j, 1)], copy_sem).wait()
        return carry

    lax.fori_loop(0, tile, drain, 0)

    out_ref[...] = (out_ref[...].astype(jnp.float32) * scale).astype(out_ref.dtype)


def _dma_gather_embed(ids_flat, table, tile, n_pad, scale, vmem_cap):
    vocab_size, d_model = table.shape
    out_itemsize = table.dtype.itemsize
    n_tiles = n_pad // tile

    needed = 2 * tile * d_model * out_itemsize + (2 << 20)
    vmem_limit = int(min(max(needed, 16 << 20), int(0.85 * vmem_cap)))

    kernel = functools.partial(_dma_gather_kernel, scale=scale, tile=tile)
    grid_spec = pltpu.PrefetchScalarGridSpec(
        num_scalar_prefetch=1,                                        # ids -> SMEM
        grid=(n_tiles,),
        in_specs=[pl.BlockSpec(memory_space=pl.ANY)],                 # table in HBM
        out_specs=pl.BlockSpec((tile, d_model), lambda i, ids: (i, 0)),
        scratch_shapes=[pltpu.SemaphoreType.DMA(())],
    )
    return pl.pallas_call(
        kernel,
        out_shape=jax.ShapeDtypeStruct((n_pad, d_model), table.dtype),
        grid_spec=grid_spec,
        compiler_params=pltpu.CompilerParams(
            dimension_semantics=("parallel",),
            vmem_limit_bytes=vmem_limit,
        ),
    )(ids_flat, table)


def input_embeddings_forward(x, embedding_table, d_model=None):
    """x: (B, S) integer token ids; embedding_table: (vocab, d_model).

    Returns embedding_table[x] * sqrt(d_model), shape (B, S, d_model),
    matching `InputEmbeddings.forward`.
    """
    B, S = x.shape
    vocab_size, dm = embedding_table.shape
    if d_model is None:
        d_model = dm
    assert dm == d_model

    vmem_cap = _vmem_capacity_bytes()
    n_tokens = B * S
    tile, n_pad = _pick_token_tile(n_tokens, d_model,
                                   embedding_table.dtype.itemsize, vmem_cap)

    ids_flat = x.reshape(n_tokens).astype(jnp.int32)
    if n_pad != n_tokens:
        ids_flat = jnp.pad(ids_flat, (0, n_pad - n_tokens))

    scale = math.sqrt(d_model)
    if _use_onehot(vocab_size, d_model, embedding_table.dtype, vmem_cap):
        out_flat = _onehot_embed(ids_flat, embedding_table, tile, n_pad, scale, vmem_cap)
    else:
        # TODO(synk): for very large B*S (>~128K tokens) the scalar-prefetched id
        # vector can outgrow SMEM; chunk the call over the token axis in that case.
        out_flat = _dma_gather_embed(ids_flat, embedding_table, tile, n_pad, scale, vmem_cap)

    if n_pad != n_tokens:
        out_flat = out_flat[:n_tokens]   # slice copy only paid when padding happened
    return out_flat.reshape(B, S, d_model)


if __name__ == "__main__":
    d_model = 128
    key = jax.random.PRNGKey(0)
    k_emb1, k_ids1, k_emb2, k_ids2 = jax.random.split(key, 4)

    # --- Path A: small vocab -> one-hot MXU gather on a VMEM-resident table ---
    vocab1, batch1, seq1 = 64, 2, 8
    table1 = jax.random.normal(k_emb1, (vocab1, d_model), dtype=jnp.float32)
    x1 = jax.random.randint(k_ids1, (batch1, seq1), 0, vocab1, dtype=jnp.int32)
    out1 = jax.block_until_ready(input_embeddings_forward(x1, table1, d_model))
    ref1 = jnp.take(table1, x1, axis=0) * math.sqrt(d_model)
    assert out1.shape == (batch1, seq1, d_model) and out1.dtype == jnp.float32
    assert jnp.allclose(out1, ref1, atol=1e-5, rtol=1e-5)

    # --- Path B: larger vocab -> HBM row-gather DMAs (also exercises padding) ---
    vocab2, batch2, seq2 = 512, 3, 5          # 15 tokens -> padded to 16
    table2 = jax.random.normal(k_emb2, (vocab2, d_model), dtype=jnp.float32)
    x2 = jax.random.randint(k_ids2, (batch2, seq2), 0, vocab2, dtype=jnp.int32)
    out2 = jax.block_until_ready(input_embeddings_forward(x2, table2, d_model))
    ref2 = jnp.take(table2, x2, axis=0) * math.sqrt(d_model)
    assert out2.shape == (batch2, seq2, d_model) and out2.dtype == jnp.float32
    assert jnp.allclose(out2, ref2, atol=1e-5, rtol=1e-5)

    print("KERNEL_OK")
</pallas_src>

<mosaic_0001>
module attributes {stable_mosaic.version = 11 : i64} {
  func.func @_onehot_embed_kernel(%arg0: i32, %arg1: memref<16x1xi32, #tpu.memory_space<vmem>>, %arg2: memref<64x128xf32, #tpu.memory_space<vmem>>, %arg3: memref<16x128xf32, #tpu.memory_space<vmem>>) attributes {dimension_semantics = [#tpu.dimension_semantics<parallel>], iteration_bounds = array<i64: 1>, scalar_prefetch = 0 : i64, scratch_operands = 0 : i64, tpu.core_type = #tpu.core_type<tc>, window_params = [{transform_indices = @transform_0, window_bounds = array<i64: 16, 1>}, {pipeline_mode = #tpu.pipeline_mode<synchronous>, transform_indices = @transform_1, window_bounds = array<i64: 64, 128>}, {transform_indices = @transform_2, window_bounds = array<i64: 16, 128>}]} {
    %c0 = arith.constant 0 : index
    %c0_0 = arith.constant 0 : index
    %0 = vector.load %arg1[%c0, %c0_0] : memref<16x1xi32, #tpu.memory_space<vmem>>, vector<16x1xi32>
    %1 = tpu.iota {dimensions = array<i32: 1>} : vector<16x64xi32>
    %2 = vector.broadcast %0 : vector<16x1xi32> to vector<16x64xi32>
    %3 = arith.cmpi eq, %1, %2 : vector<16x64xi32>
    %4 = arith.extui %3 : vector<16x64xi1> to vector<16x64xi32>
    %5 = arith.sitofp %4 : vector<16x64xi32> to vector<16x64xf32>
    %c0_1 = arith.constant 0 : index
    %c0_2 = arith.constant 0 : index
    %6 = vector.load %arg2[%c0_1, %c0_2] : memref<64x128xf32, #tpu.memory_space<vmem>>, vector<64x128xf32>
    %cst = arith.constant dense<0.000000e+00> : vector<16x128xf32>
    %7 = tpu.matmul %5, %6, %cst {dimension_numbers = #tpu.dot_dimension_numbers<[1], [0], [0], [1], [0, 0, 1, 1], [], []>} : vector<16x64xf32>, vector<64x128xf32>, vector<16x128xf32> -> vector<16x128xf32>
    %cst_3 = arith.constant 11.3137083 : f32
    %8 = vector.broadcast %cst_3 : f32 to vector<16x128xf32>
    %9 = arith.mulf %7, %8 : vector<16x128xf32>
    %c0_4 = arith.constant 0 : index
    %c0_5 = arith.constant 0 : index
    %10 = vector.load %arg3[%c0_4, %c0_5] : memref<16x128xf32, #tpu.memory_space<vmem>>, vector<16x128xf32>
    tpu.vector_store %arg3[%c0_4, %c0_5], %9 {strides = array<i32>} : memref<16x128xf32, #tpu.memory_space<vmem>>, vector<16x128xf32>,
    return
  }
  func.func @transform_0(%arg0: i32) -> (i32, i32) {
    %c0_i32 = arith.constant 0 : i32
    %c0_i32_0 = arith.constant 0 : i32
    return %arg0, %c0_i32 : i32, i32
  }
  func.func @transform_1(%arg0: i32) -> (i32, i32) {
    %c0_i32 = arith.constant 0 : i32
    %c0_i32_0 = arith.constant 0 : i32
    %c0_i32_1 = arith.constant 0 : i32
    return %c0_i32, %c0_i32_0 : i32, i32
  }
  func.func @transform_2(%arg0: i32) -> (i32, i32) {
    %c0_i32 = arith.constant 0 : i32
    %c0_i32_0 = arith.constant 0 : i32
    return %arg0, %c0_i32 : i32, i32
  }
}

</mosaic_0001>

<llo_original>
// kernel: tpu_custom_call.1
$region0: #{tpu_custom_call.1}
  #allocation0 [shape = 'u32[]', space=smem, size = 0x4, offset = 0x4, fixed_abs, tag = 'smem constant byte address 0x4 - core index']
  #allocation1 [shape = 'u32[144,128]{1,0:T(1,128)}', space=vmem, size = 0x12000, scoped, tag = 'internal scratch']
  %s0 = inlined_call_operand.vmem [shape: s32[16,1], index: 0, kind: input, shape index: {}]
  %s1 = inlined_call_operand.hbm [shape: f32[64,128], index: 1, kind: input, shape index: {}]
  %s2 = inlined_call_operand.hbm [shape: f32[16,128], index: 2, kind: output, shape index: {}]
  %s3 = sld [smem:[#allocation0]]
  $region22: #{tpu_custom_call.1} parent=0
    _
  %s5 = ssub.s32 1, %s3
  %s6 = scalar_select 0, %s5, %s3
  $region1: #{tpu_custom_call.1} parent=0
    #allocation2 [shape = 'u8[32768]{0}', space=vmem, size = 0x8000, scoped, tag = 'input window, operand 1, single buffered']
    #allocation3 [shape = 's32[1]{0}', space=sflag, size = 0x4, scoped, tag = 'scoped memory for tpu_custom_call.1']
    #allocation4 [shape = 's32[1]{0}', space=sflag, size = 0x4, scoped, tag = 'scoped memory for tpu_custom_call.1']
    #allocation5 [shape = 'u8[8192]{0}', space=vmem, size = 0x2000, scoped, tag = 'output window, operand 0, single buffered']
    %7 = vsyncpa [#allocation3], 0
    %8 = vsyncpa [#allocation4], 0
    // Predicated region
    $region2: #{tpu_custom_call.1} parent=1 // pred_check
      _
    $region3: #{tpu_custom_call.1} parent=1 // pred_check_branch
      %10 = sbr.rel (0) target = $region5
    $region4: #{tpu_custom_call.1} parent=1 // pred_region
      _
    $region5: #{tpu_custom_call.1} parent=1 // pred_fallthru
      _
    // Predicated region
    $region6: #{tpu_custom_call.1} parent=1 // pred_check
      _
    $region7: #{tpu_custom_call.1} parent=1 // pred_check_branch
      %12 = sbr.rel (0) target = $region9
    $region8: #{tpu_custom_call.1} parent=1 // pred_region
      %s14 = ssub.s32 1024, 1024
      %15 = vsyncadd [#allocation3], %s14
      %s16 = sshll.u32 [#allocation2], 4
      %s17 = int_to_ptr.vmem [resolvable:$true] %s16
      %22 = dma.hbm_to_vmem [thread:$0]  %s1, 1024, %s17, [#allocation3], 128, 128, 8
    $region9: #{tpu_custom_call.1} parent=1 // pred_fallthru
      _
    // Predicated region
    $region10: #{tpu_custom_call.1} parent=1 // pred_check
      _
    $region11: #{tpu_custom_call.1} parent=1 // pred_check_branch
      %24 = sbr.rel (0) target = $region13
    $region12: #{tpu_custom_call.1} parent=1 // pred_region
      %25 = dma.done [#allocation3], 1024
    $region13: #{tpu_custom_call.1} parent=1 // pred_fallthru
      _
    %v26 = vld [vmem:[%s0] sm:$0xff]
    %v27 = vld [vmem:[%s0 + $0x8] sm:$0xff]
    %v28 = vlaneseq
    %v29 = vand.u32 %v28, 127
    %30 = vset.pattern.permute.xlu0 0
    %31 = vperm.xlu0 %30, %v26
    %v32 = vpop.permute.xlu0 %31
    %33 = vset.pattern.permute.xlu0 0
    %34 = vperm.xlu0 %33, %v27
    %v35 = vpop.permute.xlu0 %34
    %vm36 = vcmp.eq.s32.totalorder %v29, %v32
    %vm37 = vcmp.eq.s32.totalorder %v29, %v35
    %v38 = vsel %vm36, 1, 0
    %v39 = vsel %vm37, 1, 0
    %v40 = vcvt.s32.f32 %v38
    %v41 = vcvt.s32.f32 %v39
    %v42 = vld [vmem:[#allocation2] sm:$0xff]
    %v43 = vld [vmem:[#allocation2 + $0x8] sm:$0xff]
    %v44 = vld [vmem:[#allocation2 + $0x10] sm:$0xff]
    %v45 = vld [vmem:[#allocation2 + $0x18] sm:$0xff]
    %v46 = vld [vmem:[#allocation2 + $0x20] sm:$0xff]
    %v47 = vld [vmem:[#allocation2 + $0x28] sm:$0xff]
    %v48 = vld [vmem:[#allocation2 + $0x30] sm:$0xff]
    %v49 = vld [vmem:[#allocation2 + $0x38] sm:$0xff]
    %vm50 = vcmask 523264
    %v52 = vsel %vm50, %v40, 0
    %v55 = vsel %vm50, %v41, 0
    %57 = vmatprep.subr.mxu0 0.0
    %58 = vmatpush1.msra.mxu0 0.0
    %59 = vmatprep.subr.mxu0 0.0
    %60 = vmatpush1.msra.mxu0 0.0
    %61 = vmatprep.subr.mxu0 0.0
    %62 = vmatpush1.msra.mxu0 0.0
    %63 = vmatprep.subr.mxu0 0.0
    %64 = vmatpush1.msra.mxu0 0.0
    %65 = vmatprep.subr.mxu0 0.0
    %66 = vmatpush1.msra.mxu0 0.0
    %67 = vmatprep.subr.mxu0 0.0
    %68 = vmatpush1.msra.mxu0 0.0
    %69 = vmatprep.subr.mxu0 0.0
    %70 = vmatpush1.msra.mxu0 0.0
    %71 = vmatprep.subr.mxu0 0.0
    %72 = vmatpush1.msra.mxu0 0.0
    %73 = vmatprep.subr.mxu0 0.0
    %74 = vmatpush1.msra.mxu0 %v49
    %75 = vmatprep.subr.mxu0 0.0
    %76 = vmatpush1.msra.mxu0 %v48
    %77 = vmatprep.subr.mxu0 0.0
    %78 = vmatpush1.msra.mxu0 %v47
    %79 = vmatprep.subr.mxu0 0.0
    %80 = vmatpush1.msra.mxu0 %v46
    %81 = vmatprep.subr.mxu0 0.0
    %82 = vmatpush1.msra.mxu0 %v45
    %83 = vmatprep.subr.mxu0 0.0
    %84 = vmatpush1.msra.mxu0 %v44
    %85 = vmatprep.subr.mxu0 0.0
    %86 = vmatpush1.msra.mxu0 %v43
    %87 = vmatprep.subr.mxu0 0.0
    %88 = vmatpush1.msra.mxu0 %v42
    %89 = vmatprep.subr.mxu0 0.0
    %90 = vmatpush2.msra.mxu0 0.0
    %91 = vmatprep.subr.mxu0 0.0
    %92 = vmatpush2.msra.mxu0 0.0
    %93 = vmatprep.subr.mxu0 0.0
    %94 = vmatpush2.msra.mxu0 0.0
    %95 = vmatprep.subr.mxu0 0.0
    %96 = vmatpush2.msra.mxu0 0.0
    %97 = vmatprep.subr.mxu0 0.0
    %98 = vmatpush2.msra.mxu0 0.0
    %99 = vmatprep.subr.mxu0 0.0
    %100 = vmatpush2.msra.mxu0 0.0
    %101 = vmatprep.subr.mxu0 0.0
    %102 = vmatpush2.msra.mxu0 0.0
    %103 = vmatprep.subr.mxu0 0.0
    %104 = vmatpush2.msra.mxu0 0.0
    %105 = vmatprep.subr.mxu0 0.0
    %106 = vmatpush2.msra.mxu0 0.0
    %107 = vmatprep.subr.mxu0 0.0
    %108 = vmatpush2.msra.mxu0 0.0
    %109 = vmatprep.subr.mxu0 0.0
    %110 = vmatpush2.msra.mxu0 0.0
    %111 = vmatprep.subr.mxu0 0.0
    %112 = vmatpush2.msra.mxu0 0.0
    %113 = vmatprep.subr.mxu0 0.0
    %114 = vmatpush2.msra.mxu0 0.0
    %115 = vmatprep.subr.mxu0 0.0
    %116 = vmatpush2.msra.mxu0 0.0
    %117 = vmatprep.subr.mxu0 0.0
    %118 = vmatpush2.msra.mxu0 0.0
    %119 = vmatprep.subr.mxu0 0.0
    %120 = vmatpush2.msra.mxu0 0.0
    %121 = vmatprep.mubr.f32.mxu0 0.0
    %122 = vmatmul.mubr.f32.gmra.mxu0 %v52
    %v123 = vpop.f32.mrf.mxu0
    %v124 = vadd.f32 0.0, %v123
    %v125 = vpop.f32.mrf.mxu0
    %126 = vmatprep.mubr.f32.mxu0 0.0
    %127 = vmatmul.mubr.f32.gmra.mxu0 %v55
    %v128 = vpop.f32.mrf.mxu0
    %v129 = vadd.f32 0.0, %v128
    %v130 = vpop.f32.mrf.mxu0
    %131 = vdwg.mxu0
    %v132 = vmul.f32 %v124, 11.313708
    %v133 = vmul.f32 %v129, 11.313708
    %134 = vst [vmem:[#allocation5] sm:$0xff] %v132
    %135 = vst [vmem:[#allocation5 + $0x8] sm:$0xff] %v133
    // Predicated region
    $region14: #{tpu_custom_call.1} parent=1 // pred_check
      _
    $region15: #{tpu_custom_call.1} parent=1 // pred_check_branch
      %137 = sbr.rel (0) target = $region17
    $region16: #{tpu_custom_call.1} parent=1 // pred_region
      %s139 = ssub.s32 256, 256
      %140 = vsyncadd [#allocation4], %s139
      %s141 = sshll.u32 [#allocation5], 4
      %s142 = int_to_ptr.vmem [resolvable:$true] %s141
      %147 = dma.vmem_to_hbm [thread:$0]  %s142, 256, %s2, [#allocation4], 128, 128, 8
    $region17: #{tpu_custom_call.1} parent=1 // pred_fallthru
      _
    // Predicated region
    $region18: #{tpu_custom_call.1} parent=1 // pred_check
      _
    $region19: #{tpu_custom_call.1} parent=1 // pred_check_branch
      %149 = sbr.rel (0) target = $region21
    $region20: #{tpu_custom_call.1} parent=1 // pred_region
      %150 = dma.done [#allocation4], 256
    $region21: #{tpu_custom_call.1} parent=1 // pred_fallthru
      _
    %151 = vsyncpa [#allocation3], 1
    %152 = vsyncpa [#allocation4], 1

</llo_original>
